<compile_context>
chip_gen: v5e
topology: v5e:2x2
jax: 0.10.0
libtpu: 0.0.40
codegen_flags: <defaults>
</compile_context>

<pallas_src>
import functools
import numpy as np
import jax
import jax.numpy as jnp
from jax.experimental import pallas as pl
from jax.experimental.pallas import tpu as pltpu

N_CLUSTER = 8     # stand-in for config.N_CLUSTER
L_UP = 48         # nn.Upsample(48)


# --------------------------------------------------------------------------
# Pallas kernel: one batch tile, fully fused (matmul + 2 softmax heads).
# --------------------------------------------------------------------------
def _softmax_rows(z):
    z = z - jnp.max(z, axis=1, keepdims=True)
    e = jnp.exp(z)
    return e * pl.reciprocal(jnp.sum(e, axis=1, keepdims=True), approx=True)


def net_kernel(x_ref, wf_ref, bf_ref, wl_ref, bl_ref,
               wloc_ref, bloc_ref, apool_ref, out_ref):
    f32 = jnp.float32

    # pre-composed linear chain: (TILE_B, Lin) @ (Lin, 48) + (1, 48)
    feat = jnp.dot(x_ref[...], wf_ref[...], preferred_element_type=f32) + bf_ref[...]

    # classification head: Linear(48, NC) + Softmax(dim=1)
    logits = jnp.dot(feat, wl_ref[...], preferred_element_type=f32) + bl_ref[...]
    cls = _softmax_rows(logits)                                   # (TILE_B, NC)

    # localization head: Conv1d(1, NC, k=1) -> ReLU -> AvgPool1d(48) -> Softmax
    # kept 2-D; AvgPool is an MXU matmul with A_pool (NC*48, NC).
    loc_pre = jnp.dot(feat, wloc_ref[...], preferred_element_type=f32) + bloc_ref[...]
    loc_relu = jnp.maximum(loc_pre, 0.0)                          # (TILE_B, NC*48)
    lm = jnp.dot(loc_relu, apool_ref[...], preferred_element_type=f32)  # (TILE_B, NC)
    loc = _softmax_rows(lm)

    # single lane-contiguous store: [cls | loc]
    out_ref[...] = jnp.concatenate([cls, loc], axis=1)


# --------------------------------------------------------------------------
# One-time parameter preparation (numpy): band matrices + pre-composition.
# --------------------------------------------------------------------------
def convT_band_matrix(w, padding, l_in, l_out):
    """ConvTranspose1d (stride=1) as a dense matrix on the flat (t*C + c) layout.

    out[b, t*Cout+co] = sum_{s,ci} x[b, s*Cin+ci] * W[ci, co, t + p - s]
    (PyTorch ConvTranspose1d weight layout: (Cin, Cout, K)).
    """
    cin, cout, K = w.shape
    m = np.zeros((l_in * cin, l_out * cout), np.float64)
    for s in range(l_in):
        for t in range(l_out):
            k = t + padding - s
            if 0 <= k < K:
                m[s * cin:(s + 1) * cin, t * cout:(t + 1) * cout] = w[:, :, k]
    return m


def nearest_upsample_matrix(l_in, l_out):
    """nn.Upsample(l_out, mode='nearest') on a 1-channel signal as a 0/1 matrix."""
    u = np.zeros((l_in, l_out), np.float64)
    idx = (np.arange(l_out) * l_in) // l_out
    u[idx, np.arange(l_out)] = 1.0
    return u


def prepare_inference_params(params, l_in):
    """Build the fused matrices once (host-side).  Returns jnp.float32 arrays."""
    a = lambda v: np.asarray(v, np.float64)
    w1, b1 = a(params["w1"]), a(params["b1"])
    w2, b2 = a(params["w2"]), a(params["b2"])
    w3, b3 = a(params["w3"]), a(params["b3"])

    U = nearest_upsample_matrix(l_in, L_UP)                       # (Lin, 48)
    M1 = convT_band_matrix(w1, 2, L_UP, L_UP)                     # (48, 384)
    M2 = convT_band_matrix(w2, 4, L_UP, L_UP)                     # (384, 192)
    M3 = convT_band_matrix(w3, 0, L_UP, L_UP)                     # (192, 48)
    b1t = np.tile(b1[None, :], (L_UP, 1)).reshape(1, L_UP * 8)
    b2t = np.tile(b2[None, :], (L_UP, 1)).reshape(1, L_UP * 4)
    b3t = np.tile(b3[None, :], (L_UP, 1)).reshape(1, L_UP * 1)

    # pre-compose the whole affine chain up to `feat`
    w_feat = U @ M1 @ M2 @ M3                                     # (Lin, 48)
    b_feat = b1t @ M2 @ M3 + b2t @ M3 + b3t                       # (1, 48)

    # classification head
    w_lin = a(params["wl"]).T                                     # (48, NC)
    b_lin = a(params["bl"]).reshape(1, N_CLUSTER)                 # (1, NC)

    # localization head as 2-D matmuls:
    #   loc_pre[b, c*48 + t] = feat[b, t] * wm[c] + bm[c]
    #   lm[b, c]            = mean_t relu(loc_pre[b, c*48 + t])
    wm = a(params["wm"]).reshape(N_CLUSTER)
    bm = a(params["bm"]).reshape(N_CLUSTER)
    w_loc = np.zeros((L_UP, N_CLUSTER * L_UP), np.float64)
    b_loc = np.zeros((1, N_CLUSTER * L_UP), np.float64)
    a_pool = np.zeros((N_CLUSTER * L_UP, N_CLUSTER), np.float64)
    for c in range(N_CLUSTER):
        w_loc[np.arange(L_UP), c * L_UP + np.arange(L_UP)] = wm[c]
        b_loc[0, c * L_UP:(c + 1) * L_UP] = bm[c]
        a_pool[c * L_UP:(c + 1) * L_UP, c] = 1.0 / L_UP

    cvt = lambda v: jnp.asarray(v, jnp.float32)
    return dict(w_feat=cvt(w_feat), b_feat=cvt(b_feat),
                w_lin=cvt(w_lin), b_lin=cvt(b_lin),
                w_loc=cvt(w_loc), b_loc=cvt(b_loc), a_pool=cvt(a_pool))


def init_params(key):
    ks = jax.random.split(key, 10)

    def unif(k, shape, fan_in):
        bnd = 1.0 / np.sqrt(fan_in)
        return jax.random.uniform(k, shape, jnp.float32, -bnd, bnd)

    return dict(
        w1=unif(ks[0], (1, 8, 5), 1 * 5),  b1=unif(ks[1], (8,), 1 * 5),
        w2=unif(ks[2], (8, 4, 9), 8 * 9),  b2=unif(ks[3], (4,), 8 * 9),
        w3=unif(ks[4], (4, 1, 1), 4 * 1),  b3=unif(ks[5], (1,), 4 * 1),
        wl=unif(ks[6], (N_CLUSTER, 48), 48), bl=unif(ks[7], (N_CLUSTER,), 48),
        wm=unif(ks[8], (N_CLUSTER, 1, 1), 1), bm=unif(ks[9], (N_CLUSTER,), 1),
    )


# --------------------------------------------------------------------------
# Forward wrapper: batch-tiled, pipelined pallas_call.
# --------------------------------------------------------------------------
def _round_up(n, m):
    return -(-n // m) * m


def net_forward(x, prep, batch_size, *, tile_b=512):
    B = batch_size
    x2 = jnp.reshape(x, (B, -1)).astype(jnp.float32)     # == x.reshape(B, 1, -1), C=1
    l_in = x2.shape[1]

    TB = min(tile_b, _round_up(B, 8))                    # batch tile, multiple of 8
    B_pad = _round_up(B, TB)
    if B_pad != B:
        x2 = jnp.pad(x2, ((0, B_pad - B), (0, 0)))
    grid = (B_pad // TB,)
    nc2 = 2 * N_CLUSTER

    def const_spec(arr):
        nd = arr.ndim
        return pl.BlockSpec(arr.shape, lambda i, _nd=nd: (0,) * _nd)

    out = pl.pallas_call(
        net_kernel,
        out_shape=jax.ShapeDtypeStruct((B_pad, nc2), jnp.float32),
        grid=grid,
        in_specs=[
            pl.BlockSpec((TB, l_in), lambda i: (i, 0)),
            const_spec(prep["w_feat"]), const_spec(prep["b_feat"]),
            const_spec(prep["w_lin"]), const_spec(prep["b_lin"]),
            const_spec(prep["w_loc"]), const_spec(prep["b_loc"]),
            const_spec(prep["a_pool"]),
        ],
        out_specs=pl.BlockSpec((TB, nc2), lambda i: (i, 0)),
        compiler_params=pltpu.CompilerParams(
            dimension_semantics=("parallel",)),
    )(x2, prep["w_feat"], prep["b_feat"], prep["w_lin"], prep["b_lin"],
      prep["w_loc"], prep["b_loc"], prep["a_pool"])

    return out[:B, :N_CLUSTER], out[:B, N_CLUSTER:]


net_forward_jit = jax.jit(net_forward, static_argnames=("batch_size", "tile_b"))


# --------------------------------------------------------------------------
# numpy reference (PyTorch semantics) for a sanity check
# --------------------------------------------------------------------------
def reference_forward(x, params, batch_size):
    def a(v):
        return np.asarray(v, np.float64)

    xr = a(x).reshape(batch_size, 1, -1)
    l_in = xr.shape[-1]
    idx = (np.arange(L_UP) * l_in) // L_UP
    xr = xr[:, :, idx]                                     # nearest upsample to 48

    def conv_t(h, w, b, p):
        cin, cout, K = w.shape
        B, _, L = h.shape
        Lout = L - 1 + K - 2 * p
        out = np.zeros((B, cout, Lout))
        for t in range(Lout):
            for k in range(K):
                s = t + p - k
                if 0 <= s < L:
                    out[:, :, t] += np.einsum("bi,io->bo", h[:, :, s], w[:, :, k])
        return out + b[None, :, None]

    h = conv_t(xr, a(params["w1"]), a(params["b1"]), 2)
    h = conv_t(h, a(params["w2"]), a(params["b2"]), 4)
    h = conv_t(h, a(params["w3"]), a(params["b3"]), 0)
    feat = h.reshape(batch_size, -1)                       # (B, 48)

    def softmax(z):
        z = z - z.max(1, keepdims=True)
        e = np.exp(z)
        return e / e.sum(1, keepdims=True)

    cls = softmax(feat @ a(params["wl"]).T + a(params["bl"]))
    wmv = a(params["wm"]).reshape(-1)
    bmv = a(params["bm"]).reshape(-1)
    loc = feat[:, None, :] * wmv[None, :, None] + bmv[None, :, None]
    loc = np.maximum(loc, 0.0).mean(-1)
    loc = softmax(loc)
    return cls, loc


if __name__ == "__main__":
    key = jax.random.PRNGKey(0)
    pkey, xkey = jax.random.split(key)
    params = init_params(pkey)

    batch_size = 2
    x = jax.random.normal(xkey, (batch_size, 16), jnp.float32)   # reshaped to (B, 1, 16) internally

    # one-time parameter preparation (host-side band-matrix fusion)
    prep = prepare_inference_params(params, l_in=16)

    cls, loc = net_forward_jit(x, prep, batch_size)
    jax.block_until_ready((cls, loc))

    cls_ref, loc_ref = reference_forward(x, params, batch_size)
    assert cls.shape == (batch_size, N_CLUSTER) and loc.shape == (batch_size, N_CLUSTER)
    # tolerance loosened slightly vs. 1e-4 because of pl.reciprocal(approx=True)
    np.testing.assert_allclose(np.asarray(cls), cls_ref, rtol=2e-3, atol=2e-3)
    np.testing.assert_allclose(np.asarray(loc), loc_ref, rtol=2e-3, atol=2e-3)

    print("KERNEL_OK")
</pallas_src>

<mosaic_0001>
module attributes {stable_mosaic.version = 11 : i64} {
  func.func @net_kernel(%arg0: i32, %arg1: memref<8x16xf32, #tpu.memory_space<vmem>>, %arg2: memref<16x48xf32, #tpu.memory_space<vmem>>, %arg3: memref<1x48xf32, #tpu.memory_space<vmem>>, %arg4: memref<48x8xf32, #tpu.memory_space<vmem>>, %arg5: memref<1x8xf32, #tpu.memory_space<vmem>>, %arg6: memref<48x384xf32, #tpu.memory_space<vmem>>, %arg7: memref<1x384xf32, #tpu.memory_space<vmem>>, %arg8: memref<384x8xf32, #tpu.memory_space<vmem>>, %arg9: memref<8x16xf32, #tpu.memory_space<vmem>>) attributes {dimension_semantics = [#tpu.dimension_semantics<parallel>], iteration_bounds = array<i64: 1>, scalar_prefetch = 0 : i64, scratch_operands = 0 : i64, tpu.core_type = #tpu.core_type<tc>, window_params = [{transform_indices = @transform_0, window_bounds = array<i64: 8, 16>}, {pipeline_mode = #tpu.pipeline_mode<synchronous>, transform_indices = @transform_1, window_bounds = array<i64: 16, 48>}, {pipeline_mode = #tpu.pipeline_mode<synchronous>, transform_indices = @transform_2, window_bounds = array<i64: 1, 48>}, {pipeline_mode = #tpu.pipeline_mode<synchronous>, transform_indices = @transform_3, window_bounds = array<i64: 48, 8>}, {pipeline_mode = #tpu.pipeline_mode<synchronous>, transform_indices = @transform_4, window_bounds = array<i64: 1, 8>}, {pipeline_mode = #tpu.pipeline_mode<synchronous>, transform_indices = @transform_5, window_bounds = array<i64: 48, 384>}, {pipeline_mode = #tpu.pipeline_mode<synchronous>, transform_indices = @transform_6, window_bounds = array<i64: 1, 384>}, {pipeline_mode = #tpu.pipeline_mode<synchronous>, transform_indices = @transform_7, window_bounds = array<i64: 384, 8>}, {transform_indices = @transform_8, window_bounds = array<i64: 8, 16>}]} {
    %c0 = arith.constant 0 : index
    %c0_0 = arith.constant 0 : index
    %0 = vector.load %arg1[%c0, %c0_0] : memref<8x16xf32, #tpu.memory_space<vmem>>, vector<8x16xf32>
    %c0_1 = arith.constant 0 : index
    %c0_2 = arith.constant 0 : index
    %1 = vector.load %arg2[%c0_1, %c0_2] : memref<16x48xf32, #tpu.memory_space<vmem>>, vector<16x48xf32>
    %cst = arith.constant dense<0.000000e+00> : vector<8x48xf32>
    %2 = tpu.matmul %0, %1, %cst {dimension_numbers = #tpu.dot_dimension_numbers<[1], [0], [0], [1], [0, 0, 1, 1], [], []>} : vector<8x16xf32>, vector<16x48xf32>, vector<8x48xf32> -> vector<8x48xf32>
    %c0_3 = arith.constant 0 : index
    %c0_4 = arith.constant 0 : index
    %3 = vector.load %arg3[%c0_3, %c0_4] : memref<1x48xf32, #tpu.memory_space<vmem>>, vector<1x48xf32>
    %4 = vector.broadcast %3 : vector<1x48xf32> to vector<8x48xf32>
    %5 = arith.addf %2, %4 : vector<8x48xf32>
    %c0_5 = arith.constant 0 : index
    %c0_6 = arith.constant 0 : index
    %6 = vector.load %arg4[%c0_5, %c0_6] : memref<48x8xf32, #tpu.memory_space<vmem>>, vector<48x8xf32>
    %cst_7 = arith.constant dense<0.000000e+00> : vector<8x8xf32>
    %7 = tpu.matmul %5, %6, %cst_7 {dimension_numbers = #tpu.dot_dimension_numbers<[1], [0], [0], [1], [0, 0, 1, 1], [], []>} : vector<8x48xf32>, vector<48x8xf32>, vector<8x8xf32> -> vector<8x8xf32>
    %c0_8 = arith.constant 0 : index
    %c0_9 = arith.constant 0 : index
    %8 = vector.load %arg5[%c0_8, %c0_9] : memref<1x8xf32, #tpu.memory_space<vmem>>, vector<1x8xf32>
    %9 = vector.broadcast %8 : vector<1x8xf32> to vector<8x8xf32>
    %10 = arith.addf %7, %9 : vector<8x8xf32>
    %cst_10 = arith.constant dense<0xFF800000> : vector<8xf32>
    %11 = vector.multi_reduction <maximumf>, %10, %cst_10 [1] : vector<8x8xf32> to vector<8xf32>
    %12 = vector.shape_cast %11 : vector<8xf32> to vector<8x1xf32>
    %13 = vector.broadcast %12 : vector<8x1xf32> to vector<8x8xf32>
    %14 = arith.subf %10, %13 : vector<8x8xf32>
    %15 = math.exp %14 : vector<8x8xf32>
    %cst_11 = arith.constant dense<0.000000e+00> : vector<8xf32>
    %16 = vector.multi_reduction <add>, %15, %cst_11 [1] : vector<8x8xf32> to vector<8xf32>
    %17 = vector.shape_cast %16 : vector<8xf32> to vector<8x1xf32>
    %18 = tpu.reciprocal %17 {approx = true} : vector<8x1xf32> -> vector<8x1xf32>
    %19 = vector.broadcast %18 : vector<8x1xf32> to vector<8x8xf32>
    %20 = arith.mulf %15, %19 : vector<8x8xf32>
    %c0_12 = arith.constant 0 : index
    %c0_13 = arith.constant 0 : index
    %21 = vector.load %arg6[%c0_12, %c0_13] : memref<48x384xf32, #tpu.memory_space<vmem>>, vector<48x384xf32>
    %cst_14 = arith.constant dense<0.000000e+00> : vector<8x384xf32>
    %22 = tpu.matmul %5, %21, %cst_14 {dimension_numbers = #tpu.dot_dimension_numbers<[1], [0], [0], [1], [0, 0, 1, 1], [], []>} : vector<8x48xf32>, vector<48x384xf32>, vector<8x384xf32> -> vector<8x384xf32>
    %c0_15 = arith.constant 0 : index
    %c0_16 = arith.constant 0 : index
    %23 = vector.load %arg7[%c0_15, %c0_16] : memref<1x384xf32, #tpu.memory_space<vmem>>, vector<1x384xf32>
    %24 = vector.broadcast %23 : vector<1x384xf32> to vector<8x384xf32>
    %25 = arith.addf %22, %24 : vector<8x384xf32>
    %cst_17 = arith.constant 0.000000e+00 : f32
    %26 = vector.broadcast %cst_17 : f32 to vector<8x384xf32>
    %27 = arith.maximumf %25, %26 : vector<8x384xf32>
    %c0_18 = arith.constant 0 : index
    %c0_19 = arith.constant 0 : index
    %28 = vector.load %arg8[%c0_18, %c0_19] : memref<384x8xf32, #tpu.memory_space<vmem>>, vector<384x8xf32>
    %cst_20 = arith.constant dense<0.000000e+00> : vector<8x8xf32>
    %29 = tpu.matmul %27, %28, %cst_20 {dimension_numbers = #tpu.dot_dimension_numbers<[1], [0], [0], [1], [0, 0, 1, 1], [], []>} : vector<8x384xf32>, vector<384x8xf32>, vector<8x8xf32> -> vector<8x8xf32>
    %cst_21 = arith.constant dense<0xFF800000> : vector<8xf32>
    %30 = vector.multi_reduction <maximumf>, %29, %cst_21 [1] : vector<8x8xf32> to vector<8xf32>
    %31 = vector.shape_cast %30 : vector<8xf32> to vector<8x1xf32>
    %32 = vector.broadcast %31 : vector<8x1xf32> to vector<8x8xf32>
    %33 = arith.subf %29, %32 : vector<8x8xf32>
    %34 = math.exp %33 : vector<8x8xf32>
    %cst_22 = arith.constant dense<0.000000e+00> : vector<8xf32>
    %35 = vector.multi_reduction <add>, %34, %cst_22 [1] : vector<8x8xf32> to vector<8xf32>
    %36 = vector.shape_cast %35 : vector<8xf32> to vector<8x1xf32>
    %37 = tpu.reciprocal %36 {approx = true} : vector<8x1xf32> -> vector<8x1xf32>
    %38 = vector.broadcast %37 : vector<8x1xf32> to vector<8x8xf32>
    %39 = arith.mulf %34, %38 : vector<8x8xf32>
    %40 = tpu.concatenate %20, %39 in 1 : vector<8x8xf32>, vector<8x8xf32> -> vector<8x16xf32>
    %c0_23 = arith.constant 0 : index
    %c0_24 = arith.constant 0 : index
    %41 = vector.load %arg9[%c0_23, %c0_24] : memref<8x16xf32, #tpu.memory_space<vmem>>, vector<8x16xf32>
    tpu.vector_store %arg9[%c0_23, %c0_24], %40 {strides = array<i32>} : memref<8x16xf32, #tpu.memory_space<vmem>>, vector<8x16xf32>,
    return
  }
  func.func @transform_0(%arg0: i32) -> (i32, i32) {
    %c0_i32 = arith.constant 0 : i32
    %c0_i32_0 = arith.constant 0 : i32
    return %arg0, %c0_i32 : i32, i32
  }
  func.func @transform_1(%arg0: i32) -> (i32, i32) {
    %c0_i32 = arith.constant 0 : i32
    %c0_i32_0 = arith.constant 0 : i32
    %c0_i32_1 = arith.constant 0 : i32
    return %c0_i32, %c0_i32_0 : i32, i32
  }
  func.func @transform_2(%arg0: i32) -> (i32, i32) {
    %c0_i32 = arith.constant 0 : i32
    %c0_i32_0 = arith.constant 0 : i32
    %c0_i32_1 = arith.constant 0 : i32
    return %c0_i32, %c0_i32_0 : i32, i32
  }
  func.func @transform_3(%arg0: i32) -> (i32, i32) {
    %c0_i32 = arith.constant 0 : i32
    %c0_i32_0 = arith.constant 0 : i32
    %c0_i32_1 = arith.constant 0 : i32
    return %c0_i32, %c0_i32_0 : i32, i32
  }
  func.func @transform_4(%arg0: i32) -> (i32, i32) {
    %c0_i32 = arith.constant 0 : i32
    %c0_i32_0 = arith.constant 0 : i32
    %c0_i32_1 = arith.constant 0 : i32
    return %c0_i32, %c0_i32_0 : i32, i32
  }
  func.func @transform_5(%arg0: i32) -> (i32, i32) {
    %c0_i32 = arith.constant 0 : i32
    %c0_i32_0 = arith.constant 0 : i32
    %c0_i32_1 = arith.constant 0 : i32
    return %c0_i32, %c0_i32_0 : i32, i32
  }
  func.func @transform_6(%arg0: i32) -> (i32, i32) {
    %c0_i32 = arith.constant 0 : i32
    %c0_i32_0 = arith.constant 0 : i32
    %c0_i32_1 = arith.constant 0 : i32
    return %c0_i32, %c0_i32_0 : i32, i32
  }
  func.func @transform_7(%arg0: i32) -> (i32, i32) {
    %c0_i32 = arith.constant 0 : i32
    %c0_i32_0 = arith.constant 0 : i32
    %c0_i32_1 = arith.constant 0 : i32
    return %c0_i32, %c0_i32_0 : i32, i32
  }
  func.func @transform_8(%arg0: i32) -> (i32, i32) {
    %c0_i32 = arith.constant 0 : i32
    %c0_i32_0 = arith.constant 0 : i32
    return %arg0, %c0_i32 : i32, i32
  }
}

</mosaic_0001>

<llo_original>
// kernel: net_forward.1
$region0: #{net_forward.1}
  #allocation0 [shape = 'u32[]', space=smem, size = 0x4, offset = 0x4, fixed_abs, tag = 'smem constant byte address 0x4 - core index']
  #allocation1 [shape = 'u32[72,128]{1,0:T(1,128)}', space=vmem, size = 0x9000, scoped, tag = 'internal scratch']
  %s0 = inlined_call_operand.vmem [shape: f32[8,16], index: 0, kind: input, shape index: {}]
  %s1 = inlined_call_operand.vmem [shape: f32[16,48], index: 1, kind: input, shape index: {}]
  %s2 = inlined_call_operand.vmem [shape: f32[1,48], index: 2, kind: input, shape index: {}]
  %s3 = inlined_call_operand.vmem [shape: f32[48,8], index: 3, kind: input, shape index: {}]
  %s4 = inlined_call_operand.vmem [shape: f32[1,8], index: 4, kind: input, shape index: {}]
  %s5 = inlined_call_operand.vmem [shape: f32[48,384], index: 5, kind: input, shape index: {}]
  %s6 = inlined_call_operand.vmem [shape: f32[1,384], index: 6, kind: input, shape index: {}]
  %s7 = inlined_call_operand.vmem [shape: f32[384,8], index: 7, kind: input, shape index: {}]
  %s8 = inlined_call_operand.vmem [shape: f32[8,16], index: 8, kind: output, shape index: {}]
  %s9 = sld [smem:[#allocation0]]
  $region42: #{net_forward.1} parent=0
    _
  %s11 = ssub.s32 1, %s9
  %s12 = scalar_select 0, %s11, %s9
  // Predicated region
  $region2: #{net_forward.1} parent=0 // pred_check
    _
  $region3: #{net_forward.1} parent=0 // pred_check_branch
    %14 = sbr.rel (0) target = $region5
  $region4: #{net_forward.1} parent=0 // pred_region
    _
  $region5: #{net_forward.1} parent=0 // pred_fallthru
    _
  // Predicated region
  $region6: #{net_forward.1} parent=0 // pred_check
    _
  $region7: #{net_forward.1} parent=0 // pred_check_branch
    %16 = sbr.rel (0) target = $region9
  $region8: #{net_forward.1} parent=0 // pred_region
    _
  $region9: #{net_forward.1} parent=0 // pred_fallthru
    _
  // Predicated region
  $region10: #{net_forward.1} parent=0 // pred_check
    _
  $region11: #{net_forward.1} parent=0 // pred_check_branch
    %18 = sbr.rel (0) target = $region13
  $region12: #{net_forward.1} parent=0 // pred_region
    _
  $region13: #{net_forward.1} parent=0 // pred_fallthru
    _
  // Predicated region
  $region14: #{net_forward.1} parent=0 // pred_check
    _
  $region15: #{net_forward.1} parent=0 // pred_check_branch
    %20 = sbr.rel (0) target = $region17
  $region16: #{net_forward.1} parent=0 // pred_region
    _
  $region17: #{net_forward.1} parent=0 // pred_fallthru
    _
  // Predicated region
  $region18: #{net_forward.1} parent=0 // pred_check
    _
  $region19: #{net_forward.1} parent=0 // pred_check_branch
    %22 = sbr.rel (0) target = $region21
  $region20: #{net_forward.1} parent=0 // pred_region
    _
  $region21: #{net_forward.1} parent=0 // pred_fallthru
    _
  // Predicated region
  $region22: #{net_forward.1} parent=0 // pred_check
    _
  $region23: #{net_forward.1} parent=0 // pred_check_branch
    %24 = sbr.rel (0) target = $region25
  $region24: #{net_forward.1} parent=0 // pred_region
    _
  $region25: #{net_forward.1} parent=0 // pred_fallthru
    _
  // Predicated region
  $region26: #{net_forward.1} parent=0 // pred_check
    _
  $region27: #{net_forward.1} parent=0 // pred_check_branch
    %26 = sbr.rel (0) target = $region29
  $region28: #{net_forward.1} parent=0 // pred_region
    _
  $region29: #{net_forward.1} parent=0 // pred_fallthru
    _
  // Predicated region
  $region30: #{net_forward.1} parent=0 // pred_check
    _
  $region31: #{net_forward.1} parent=0 // pred_check_branch
    %28 = sbr.rel (0) target = $region33
  $region32: #{net_forward.1} parent=0 // pred_region
    _
  $region33: #{net_forward.1} parent=0 // pred_fallthru
    _
  %v29 = vld [vmem:[%s0] sm:$0xff]
  %v30 = vld [vmem:[%s1] sm:$0xff]
  %v31 = vld [vmem:[%s1 + $0x8] sm:$0xff]
  %v32 = vld [vmem:[%s2] sm:$0x1]
  %v34 = vperm.slane %v32, 0
  %vm36 = vcmask 130048
  %v38 = vsel %vm36, %v29, 0
  %40 = vmatpush.msra.mxu0 0.0
  %41 = vmatpush.msra.mxu0 0.0
  %42 = vmatpush.msra.mxu0 0.0
  %43 = vmatpush.msra.mxu0 0.0
  %44 = vmatpush.msra.mxu0 0.0
  %45 = vmatpush.msra.mxu0 0.0
  %46 = vmatpush.msra.mxu0 0.0
  %47 = vmatpush.msra.mxu0 0.0
  %48 = vmatpush.msra.mxu0 0.0
  %49 = vmatpush.msra.mxu0 0.0
  %50 = vmatpush.msra.mxu0 0.0
  %51 = vmatpush.msra.mxu0 0.0
  %52 = vmatpush.msra.mxu0 0.0
  %53 = vmatpush.msra.mxu0 0.0
  %54 = vmatpush.msra.mxu0 %v31
  %55 = vmatpush.msra.mxu0 %v30
  %56 = vmatmul.f32.gmra.mxu0 %v38
  %v57 = vpop.f32.mrf.mxu0
  %v58 = vadd.f32 %v34, %v57
  %59 = vdwg.mxu0
  %v60 = vld [vmem:[%s3] sm:$0xff]
  %v61 = vld [vmem:[%s3 + $0x8] sm:$0xff]
  %v62 = vld [vmem:[%s3 + $0x10] sm:$0xff]
  %v63 = vld [vmem:[%s3 + $0x18] sm:$0xff]
  %v64 = vld [vmem:[%s3 + $0x20] sm:$0xff]
  %v65 = vld [vmem:[%s3 + $0x28] sm:$0xff]
  %v66 = vld [vmem:[%s4] sm:$0x1]
  %v68 = vperm.slane %v66, 0
  %vm70 = vcmask 392192
  %v72 = vsel %vm70, %v58, 0
  %74 = vmatpush.msra.mxu0 0.0
  %75 = vmatpush.msra.mxu0 0.0
  %76 = vmatpush.msra.mxu0 0.0
  %77 = vmatpush.msra.mxu0 0.0
  %78 = vmatpush.msra.mxu0 0.0
  %79 = vmatpush.msra.mxu0 0.0
  %80 = vmatpush.msra.mxu0 0.0
  %81 = vmatpush.msra.mxu0 0.0
  %82 = vmatpush.msra.mxu0 0.0
  %83 = vmatpush.msra.mxu0 0.0
  %84 = vmatpush.msra.mxu0 %v65
  %85 = vmatpush.msra.mxu0 %v64
  %86 = vmatpush.msra.mxu0 %v63
  %87 = vmatpush.msra.mxu0 %v62
  %88 = vmatpush.msra.mxu0 %v61
  %89 = vmatpush.msra.mxu0 %v60
  %90 = vmatmul.f32.gmra.mxu0 %v72
  %v91 = vpop.f32.mrf.mxu0
  %v92 = vadd.f32 %v68, %v91
  %93 = vdwg.mxu0
  %vm94 = vcmask 64512
  %v95 = vsel %vm94, %v92, -inf
  %96 = vmax.xlane.f32.xlu0 %v95
  %v97 = vpop.xlane.xlu0 %96
  %v98 = vsub.f32 %v92, %v97
  %v99 = vmul.f32 %v98, 1.442695
  %v100 = vpow.pop %v99
  %v101 = vsel %vm94, %v100, 0.0
  %102 = vadd.xlane.f32.xlu0 %v101
  %v103 = vpop.xlane.xlu0 %102
  %v104 = vrcp.pop %v103
  %v105 = vmul.f32 %v100, %v104
  %v106 = vld [vmem:[%s5] sm:$0xff]
  %v107 = vld [vmem:[%s5 + $0x8] sm:$0xff]
  %v108 = vld [vmem:[%s5 + $0x10] sm:$0xff]
  %v109 = vld [vmem:[%s5 + $0x18] sm:$0xff]
  %v110 = vld [vmem:[%s5 + $0x20] sm:$0xff]
  %v111 = vld [vmem:[%s5 + $0x28] sm:$0xff]
  %v112 = vld [vmem:[%s5 + $0x30] sm:$0xff]
  %v113 = vld [vmem:[%s5 + $0x38] sm:$0xff]
  %v114 = vld [vmem:[%s5 + $0x40] sm:$0xff]
  %v115 = vld [vmem:[%s5 + $0x48] sm:$0xff]
  %v116 = vld [vmem:[%s5 + $0x50] sm:$0xff]
  %v117 = vld [vmem:[%s5 + $0x58] sm:$0xff]
  %v118 = vld [vmem:[%s5 + $0x60] sm:$0xff]
  %v119 = vld [vmem:[%s5 + $0x68] sm:$0xff]
  %v120 = vld [vmem:[%s5 + $0x70] sm:$0xff]
  %v121 = vld [vmem:[%s5 + $0x78] sm:$0xff]
  %v122 = vld [vmem:[%s5 + $0x80] sm:$0xff]
  %v123 = vld [vmem:[%s5 + $0x88] sm:$0xff]
  %v124 = vld [vmem:[%s6] sm:$0x7]
  %v126 = vperm.slane %v124, 0
  %v127 = vperm.slane %v124, 1
  %v128 = vperm.slane %v124, 2
  %132 = vmatpush.msra.mxu0 0.0
  %133 = vmatpush.msra.mxu0 0.0
  %134 = vmatpush.msra.mxu0 0.0
  %135 = vmatpush.msra.mxu0 0.0
  %136 = vmatpush.msra.mxu0 0.0
  %137 = vmatpush.msra.mxu0 0.0
  %138 = vmatpush.msra.mxu0 0.0
  %139 = vmatpush.msra.mxu0 0.0
  %140 = vmatpush.msra.mxu0 0.0
  %141 = vmatpush.msra.mxu0 0.0
  %142 = vmatpush.msra.mxu0 %v121
  %143 = vmatpush.msra.mxu0 %v118
  %144 = vmatpush.msra.mxu0 %v115
  %145 = vmatpush.msra.mxu0 %v112
  %146 = vmatpush.msra.mxu0 %v109
  %147 = vmatpush.msra.mxu0 %v106
  %148 = vmatmul.f32.gmra.mxu0 %v72
  %v149 = vpop.f32.mrf.mxu0
  %v150 = vadd.f32 %v126, %v149
  %151 = vdwg.mxu0
  %152 = vmatpush.msra.mxu0 0.0
  %153 = vmatpush.msra.mxu0 0.0
  %154 = vmatpush.msra.mxu0 0.0
  %155 = vmatpush.msra.mxu0 0.0
  %156 = vmatpush.msra.mxu0 0.0
  %157 = vmatpush.msra.mxu0 0.0
  %158 = vmatpush.msra.mxu0 0.0
  %159 = vmatpush.msra.mxu0 0.0
  %160 = vmatpush.msra.mxu0 0.0
  %161 = vmatpush.msra.mxu0 0.0
  %162 = vmatpush.msra.mxu0 %v122
  %163 = vmatpush.msra.mxu0 %v119
  %164 = vmatpush.msra.mxu0 %v116
  %165 = vmatpush.msra.mxu0 %v113
  %166 = vmatpush.msra.mxu0 %v110
  %167 = vmatpush.msra.mxu0 %v107
  %168 = vmatmul.f32.gmra.mxu0 %v72
  %v169 = vpop.f32.mrf.mxu0
  %v170 = vadd.f32 %v127, %v169
  %171 = vdwg.mxu0
  %172 = vmatpush.msra.mxu0 0.0
  %173 = vmatpush.msra.mxu0 0.0
  %174 = vmatpush.msra.mxu0 0.0
  %175 = vmatpush.msra.mxu0 0.0
  %176 = vmatpush.msra.mxu0 0.0
  %177 = vmatpush.msra.mxu0 0.0
  %178 = vmatpush.msra.mxu0 0.0
  %179 = vmatpush.msra.mxu0 0.0
  %180 = vmatpush.msra.mxu0 0.0
  %181 = vmatpush.msra.mxu0 0.0
  %182 = vmatpush.msra.mxu0 %v123
  %183 = vmatpush.msra.mxu0 %v120
  %184 = vmatpush.msra.mxu0 %v117
  %185 = vmatpush.msra.mxu0 %v114
  %186 = vmatpush.msra.mxu0 %v111
  %187 = vmatpush.msra.mxu0 %v108
  %188 = vmatmul.f32.gmra.mxu0 %v72
  %v189 = vpop.f32.mrf.mxu0
  %v190 = vadd.f32 %v128, %v189
  %191 = vdwg.mxu0
  %v192 = vmax.f32 %v150, 0.0
  %v193 = vmax.f32 %v170, 0.0
  %v194 = vmax.f32 %v190, 0.0
  %v195 = vld [vmem:[%s7] sm:$0xff]
  %v196 = vld [vmem:[%s7 + $0x8] sm:$0xff]
  %v197 = vld [vmem:[%s7 + $0x10] sm:$0xff]
  %v198 = vld [vmem:[%s7 + $0x18] sm:$0xff]
  %v199 = vld [vmem:[%s7 + $0x20] sm:$0xff]
  %v200 = vld [vmem:[%s7 + $0x28] sm:$0xff]
  %v201 = vld [vmem:[%s7 + $0x30] sm:$0xff]
  %v202 = vld [vmem:[%s7 + $0x38] sm:$0xff]
  %v203 = vld [vmem:[%s7 + $0x40] sm:$0xff]
  %v204 = vld [vmem:[%s7 + $0x48] sm:$0xff]
  %v205 = vld [vmem:[%s7 + $0x50] sm:$0xff]
  %v206 = vld [vmem:[%s7 + $0x58] sm:$0xff]
  %v207 = vld [vmem:[%s7 + $0x60] sm:$0xff]
  %v208 = vld [vmem:[%s7 + $0x68] sm:$0xff]
  %v209 = vld [vmem:[%s7 + $0x70] sm:$0xff]
  %v210 = vld [vmem:[%s7 + $0x78] sm:$0xff]
  %v211 = vld [vmem:[%s7 + $0x80] sm:$0xff]
  %v212 = vld [vmem:[%s7 + $0x88] sm:$0xff]
  %v213 = vld [vmem:[%s7 + $0x90] sm:$0xff]
  %v214 = vld [vmem:[%s7 + $0x98] sm:$0xff]
  %v215 = vld [vmem:[%s7 + $0xa0] sm:$0xff]
  %v216 = vld [vmem:[%s7 + $0xa8] sm:$0xff]
  %v217 = vld [vmem:[%s7 + $0xb0] sm:$0xff]
  %v218 = vld [vmem:[%s7 + $0xb8] sm:$0xff]
  %v219 = vld [vmem:[%s7 + $0xc0] sm:$0xff]
  %v220 = vld [vmem:[%s7 + $0xc8] sm:$0xff]
  %v221 = vld [vmem:[%s7 + $0xd0] sm:$0xff]
  %v222 = vld [vmem:[%s7 + $0xd8] sm:$0xff]
  %v223 = vld [vmem:[%s7 + $0xe0] sm:$0xff]
  %v224 = vld [vmem:[%s7 + $0xe8] sm:$0xff]
  %v225 = vld [vmem:[%s7 + $0xf0] sm:$0xff]
  %v226 = vld [vmem:[%s7 + $0xf8] sm:$0xff]
  %v227 = vld [vmem:[%s7 + $0x100] sm:$0xff]
  %v228 = vld [vmem:[%s7 + $0x108] sm:$0xff]
  %v229 = vld [vmem:[%s7 + $0x110] sm:$0xff]
  %v230 = vld [vmem:[%s7 + $0x118] sm:$0xff]
  %v231 = vld [vmem:[%s7 + $0x120] sm:$0xff]
  %v232 = vld [vmem:[%s7 + $0x128] sm:$0xff]
  %v233 = vld [vmem:[%s7 + $0x130] sm:$0xff]
  %v234 = vld [vmem:[%s7 + $0x138] sm:$0xff]
  %v235 = vld [vmem:[%s7 + $0x140] sm:$0xff]
  %v236 = vld [vmem:[%s7 + $0x148] sm:$0xff]
  %v237 = vld [vmem:[%s7 + $0x150] sm:$0xff]
  %v238 = vld [vmem:[%s7 + $0x158] sm:$0xff]
  %v239 = vld [vmem:[%s7 + $0x160] sm:$0xff]
  %v240 = vld [vmem:[%s7 + $0x168] sm:$0xff]
  %v241 = vld [vmem:[%s7 + $0x170] sm:$0xff]
  %v242 = vld [vmem:[%s7 + $0x178] sm:$0xff]
  %243 = vmatpush.msra.mxu0 %v210
  %244 = vmatpush.msra.mxu0 %v209
  %245 = vmatpush.msra.mxu0 %v208
  %246 = vmatpush.msra.mxu0 %v207
  %247 = vmatpush.msra.mxu0 %v206
  %248 = vmatpush.msra.mxu0 %v205
  %249 = vmatpush.msra.mxu0 %v204
  %250 = vmatpush.msra.mxu0 %v203
  %251 = vmatpush.msra.mxu0 %v202
  %252 = vmatpush.msra.mxu0 %v201
  %253 = vmatpush.msra.mxu0 %v200
  %254 = vmatpush.msra.mxu0 %v199
  %255 = vmatpush.msra.mxu0 %v198
  %256 = vmatpush.msra.mxu0 %v197
  %257 = vmatpush.msra.mxu0 %v196
  %258 = vmatpush.msra.mxu0 %v195
  %259 = vmatmul.f32.gmra.mxu0 %v192
  %v260 = vpop.f32.mrf.mxu0
  %v261 = vadd.f32 0.0, %v260
  %262 = vdwg.mxu0
  %263 = vmatpush.msra.mxu0 %v226
  %264 = vmatpush.msra.mxu0 %v225
  %265 = vmatpush.msra.mxu0 %v224
  %266 = vmatpush.msra.mxu0 %v223
  %267 = vmatpush.msra.mxu0 %v222
  %268 = vmatpush.msra.mxu0 %v221
  %269 = vmatpush.msra.mxu0 %v220
  %270 = vmatpush.msra.mxu0 %v219
  %271 = vmatpush.msra.mxu0 %v218
  %272 = vmatpush.msra.mxu0 %v217
  %273 = vmatpush.msra.mxu0 %v216
  %274 = vmatpush.msra.mxu0 %v215
  %275 = vmatpush.msra.mxu0 %v214
  %276 = vmatpush.msra.mxu0 %v213
  %277 = vmatpush.msra.mxu0 %v212
  %278 = vmatpush.msra.mxu0 %v211
  %279 = vmatmul.f32.gmra.mxu0 %v193
  %v280 = vpop.f32.mrf.mxu0
  %v281 = vadd.f32 %v261, %v280
  %282 = vdwg.mxu0
  %283 = vmatpush.msra.mxu0 %v242
  %284 = vmatpush.msra.mxu0 %v241
  %285 = vmatpush.msra.mxu0 %v240
  %286 = vmatpush.msra.mxu0 %v239
  %287 = vmatpush.msra.mxu0 %v238
  %288 = vmatpush.msra.mxu0 %v237
  %289 = vmatpush.msra.mxu0 %v236
  %290 = vmatpush.msra.mxu0 %v235
  %291 = vmatpush.msra.mxu0 %v234
  %292 = vmatpush.msra.mxu0 %v233
  %293 = vmatpush.msra.mxu0 %v232
  %294 = vmatpush.msra.mxu0 %v231
  %295 = vmatpush.msra.mxu0 %v230
  %296 = vmatpush.msra.mxu0 %v229
  %297 = vmatpush.msra.mxu0 %v228
  %298 = vmatpush.msra.mxu0 %v227
  %299 = vmatmul.f32.gmra.mxu0 %v194
  %v300 = vpop.f32.mrf.mxu0
  %v301 = vadd.f32 %v281, %v300
  %302 = vdwg.mxu0
  %v303 = vsel %vm94, %v301, -inf
  %304 = vmax.xlane.f32.xlu0 %v303
  %v305 = vpop.xlane.xlu0 %304
  %v306 = vsub.f32 %v301, %v305
  %v307 = vmul.f32 %v306, 1.442695
  %v308 = vpow.pop %v307
  %v309 = vsel %vm94, %v308, 0.0
  %310 = vadd.xlane.f32.xlu0 %v309
  %v311 = vpop.xlane.xlu0 %310
  %v312 = vrcp.pop %v311
  %v313 = vmul.f32 %v308, %v312
  %315 = vrot.lane.b32.xlu0 %v313, 8
  %v316 = vpop.permute.xlu0 %315
  %v318 = vsel %vm94, %v105, %v316
  %319 = vst.msk [vmem:[%s8] sm:$0xff] %vm36, %v318
  // Predicated region
  $region34: #{net_forward.1} parent=0 // pred_check
    _
  $region35: #{net_forward.1} parent=0 // pred_check_branch
    %321 = sbr.rel (0) target = $region37
  $region36: #{net_forward.1} parent=0 // pred_region
    _
  $region37: #{net_forward.1} parent=0 // pred_fallthru
    _
  // Predicated region
  $region38: #{net_forward.1} parent=0 // pred_check
    _
  $region39: #{net_forward.1} parent=0 // pred_check_branch
    %323 = sbr.rel (0) target = $region41
  $region40: #{net_forward.1} parent=0 // pred_region
    _
  $region41: #{net_forward.1} parent=0 // pred_fallthru
    _

</llo_original>
